<compile_context>
chip_gen: v7x
topology: tpu7x:2x2x1
jax: 0.10.0
libtpu: 0.0.40
codegen_flags: <defaults>
</compile_context>

<pallas_src>
import functools
import math

import jax
import jax.numpy as jnp
from jax import lax
from jax.experimental import pallas as pl
from jax.experimental.pallas import tpu as pltpu

LANES = 128


def _round_up(x, m):
    return (x + m - 1) // m * m


def _gelu(x):
    # tanh-approx GELU in f32 (EUP-friendly).
    # TODO(synk): PyTorch nn.GELU defaults to the exact erf form; tanh approx differs at ~1e-3 level.
    return 0.5 * x * (1.0 + jnp.tanh(0.7978845608028654 * (x + 0.044715 * x * x * x)))


# ----------------------------- fused forward kernel -----------------------------

def _fused_forward_kernel(patches_ref, w_patch_ref, b_patch_ref, txt_ref,
                          w_q_ref, b_q_ref, mask_ref, *, inv_sqrt_d):
    # ---- image_encoder: patch embedding (bf16 MXU operands, f32 accumulate) ----
    img = jnp.dot(patches_ref[...], w_patch_ref[...],
                  preferred_element_type=jnp.float32) + b_patch_ref[...]        # [tm, D] f32

    # ---- text_encoder projection was hoisted to the jitted wrapper; just add the row ----
    h = (img + txt_ref[...]).astype(w_q_ref.dtype)                              # [tm, D] bf16

    # ---- query_net: gelu((img + txt) @ Wq + bq) ----
    q = _gelu(jnp.dot(h, w_q_ref[...],
                      preferred_element_type=jnp.float32) + b_q_ref[...])       # [tm, D] f32

    # ---- mask_decoder: sigmoid(<q[r], img[r]> / sqrt(D)) per row ----
    logits = jnp.sum(q * img, axis=-1, keepdims=True) * inv_sqrt_d              # [tm, 1] f32 (XLU)
    mask_col = jax.nn.sigmoid(logits)                                           # [tm, 1] f32

    # Lane-dense writeback: scatter the tm per-row values onto the lane axis of sublane 0.
    tm = mask_col.shape[0]
    row_ids = lax.broadcasted_iota(jnp.int32, (tm, LANES), 0)
    col_ids = lax.broadcasted_iota(jnp.int32, (tm, LANES), 1)
    row0 = jnp.sum(jnp.where(row_ids == col_ids, mask_col, 0.0),
                   axis=0, keepdims=True)                                       # [1, 128] f32
    mask_ref[...] = jnp.zeros_like(mask_ref)                                    # (8, 128) tile
    mask_ref[0:1, :] = row0


def fused_forward(patches, w_patch, b_patch, txt_row, w_q, b_q, *, tm):
    """Single fused pallas_call. patches: [Mp, Kp] bf16, Mp = G*tm, tm mult of 8 and <= 128."""
    Mp, Kp = patches.shape
    D = w_patch.shape[1]
    G = Mp // tm
    return pl.pallas_call(
        functools.partial(_fused_forward_kernel, inv_sqrt_d=1.0 / math.sqrt(D)),
        out_shape=jax.ShapeDtypeStruct((G * 8, LANES), jnp.float32),
        grid_spec=pltpu.PrefetchScalarGridSpec(
            num_scalar_prefetch=0,
            grid=(G,),                                       # row tiles; weights stay resident
            in_specs=[
                pl.BlockSpec((tm, Kp), lambda i: (i, 0)),    # patches (row tile)
                pl.BlockSpec((Kp, D), lambda i: (0, 0)),     # w_patch (K padded to 128)
                pl.BlockSpec((1, D), lambda i: (0, 0)),      # b_patch
                pl.BlockSpec((1, D), lambda i: (0, 0)),      # precomputed text projection row
                pl.BlockSpec((D, D), lambda i: (0, 0)),      # w_q
                pl.BlockSpec((1, D), lambda i: (0, 0)),      # b_q
            ],
            out_specs=pl.BlockSpec((8, LANES), lambda i: (i, 0)),
        ),
        compiler_params=pltpu.CompilerParams(dimension_semantics=("parallel",)),
    )(patches, w_patch, b_patch, txt_row, w_q, b_q)


# ----------------------------- jitted wrapper forward -----------------------------

@functools.partial(jax.jit, static_argnames=("patch",))
def _jitted_forward(images, token_ids, tok_emb, w_text, b_text,
                    w_patch, b_patch, w_q, b_q, *, patch):
    B, C, H, W = images.shape
    P = patch
    Hp, Wp = H // P, W // P
    Kp, D = w_patch.shape

    # --- text_encoder: token-embedding gather + mean pool + 1-row projection (XLA glue) ---
    emb = jnp.take(tok_emb, token_ids, axis=0)                     # [T, D] f32
    pooled = jnp.mean(emb, axis=0, keepdims=True)                  # [1, D] f32
    txt_row = pooled @ w_text + b_text                             # [1, D] f32 (hoisted out of kernel)

    # --- image_encoder (patching part): NCHW -> [Mp, Kp] bf16, zero-padded ---
    x = images.reshape(B, C, Hp, P, Wp, P)
    x = jnp.transpose(x, (0, 2, 4, 1, 3, 5)).reshape(B * Hp * Wp, C * P * P)
    M = B * Hp * Wp
    tm = _round_up(M, 8) if M <= LANES else LANES                  # row tile (static)
    Mp = _round_up(M, tm)
    x = jnp.pad(x, ((0, Mp - M), (0, Kp - C * P * P))).astype(jnp.bfloat16)

    # --- fused kernel: patch embed + query_net + mask_decoder ---
    mask_out = fused_forward(x, w_patch, b_patch, txt_row, w_q, b_q, tm=tm)   # [G*8, 128]

    G = Mp // tm
    # Padded rows (M..Mp-1) carry junk sigmoids; slice them off here.
    mask_flat = mask_out.reshape(G, 8, LANES)[:, 0, :tm].reshape(-1)[:M]
    return mask_flat.reshape(B, 1, Hp, Wp)                         # NCHW mask


# ----------------------------- BaseModel wrapper -----------------------------

class BaseModelPallas:
    """Mirrors BaseModel.forward(images, text_prompt) -> mask (heavy math in one fused kernel)."""

    def __init__(self, *, img_channels=4, patch=4, hidden=128, vocab=64, max_tokens=8, key=None):
        self.C = img_channels
        self.P = patch
        self.D = hidden
        self.V = vocab
        self.T = max_tokens
        if key is None:
            key = jax.random.PRNGKey(0)
        ks = jax.random.split(key, 4)
        s = 0.02

        patch_dim = self.C * self.P * self.P
        self.Kp = _round_up(patch_dim, LANES)  # pad contraction dim to lane width

        # image encoder (patch embed) — rows zero-padded from patch_dim to Kp, stored bf16 for MXU
        w_patch = (s * jax.random.normal(ks[0], (patch_dim, hidden))).astype(jnp.bfloat16)
        self.w_patch = jnp.zeros((self.Kp, hidden), jnp.bfloat16).at[:patch_dim].set(w_patch)
        self.b_patch = jnp.zeros((1, hidden), jnp.float32)

        # text encoder (projection is computed in the jitted wrapper, so keep f32)
        self.tok_emb = (s * jax.random.normal(ks[1], (vocab, hidden))).astype(jnp.float32)
        self.w_text = (s * jax.random.normal(ks[2], (hidden, hidden))).astype(jnp.float32)
        self.b_text = jnp.zeros((1, hidden), jnp.float32)

        # query net (bf16 MXU operand)
        self.w_q = (s * jax.random.normal(ks[3], (hidden, hidden))).astype(jnp.bfloat16)
        self.b_q = jnp.zeros((1, hidden), jnp.float32)

    # --- host-side glue: string tokenization has no Pallas / XLA equivalent ---
    def _tokenize(self, text_prompt: str):
        # TODO(synk): real tokenizer is host-side string processing; kept outside jit by necessity.
        ids = [ord(c) % self.V for c in text_prompt][: self.T]
        ids = ids + [0] * (self.T - len(ids))
        return jnp.asarray(ids, dtype=jnp.int32)

    # --- forward: same logical composition as the PyTorch module ---
    def forward(self, images, text_prompt):
        token_ids = self._tokenize(text_prompt)
        return _jitted_forward(images, token_ids, self.tok_emb, self.w_text, self.b_text,
                               self.w_patch, self.b_patch, self.w_q, self.b_q, patch=self.P)


if __name__ == "__main__":
    key = jax.random.PRNGKey(0)
    k_img, k_model = jax.random.split(key)

    B, C, H, W = 2, 4, 16, 16
    images = jax.random.normal(k_img, (B, C, H, W), dtype=jnp.float32)  # NCHW, like PyTorch
    text_prompt = "segment the red object"

    model = BaseModelPallas(img_channels=C, patch=4, hidden=128, vocab=64, max_tokens=8, key=k_model)
    mask = jax.block_until_ready(model.forward(images, text_prompt))

    assert mask.shape == (B, 1, H // 4, W // 4), mask.shape
    assert bool(jnp.all(jnp.isfinite(mask)))
    assert bool(jnp.all((mask >= 0.0) & (mask <= 1.0)))
    print("KERNEL_OK")
</pallas_src>

<mosaic_0001>
module attributes {stable_mosaic.version = 11 : i64} {
  func.func @_fused_forward_kernel(%arg0: i32, %arg1: memref<32x128xbf16, #tpu.memory_space<vmem>>, %arg2: memref<128x128xbf16, #tpu.memory_space<vmem>>, %arg3: memref<1x128xf32, #tpu.memory_space<vmem>>, %arg4: memref<1x128xf32, #tpu.memory_space<vmem>>, %arg5: memref<128x128xbf16, #tpu.memory_space<vmem>>, %arg6: memref<1x128xf32, #tpu.memory_space<vmem>>, %arg7: memref<8x128xf32, #tpu.memory_space<vmem>>) attributes {dimension_semantics = [#tpu.dimension_semantics<parallel>], iteration_bounds = array<i64: 1>, scalar_prefetch = 0 : i64, scratch_operands = 0 : i64, tpu.core_type = #tpu.core_type<tc>, window_params = [{transform_indices = @transform_0, window_bounds = array<i64: 32, 128>}, {pipeline_mode = #tpu.pipeline_mode<synchronous>, transform_indices = @transform_1, window_bounds = array<i64: 128, 128>}, {pipeline_mode = #tpu.pipeline_mode<synchronous>, transform_indices = @transform_2, window_bounds = array<i64: 1, 128>}, {pipeline_mode = #tpu.pipeline_mode<synchronous>, transform_indices = @transform_3, window_bounds = array<i64: 1, 128>}, {pipeline_mode = #tpu.pipeline_mode<synchronous>, transform_indices = @transform_4, window_bounds = array<i64: 128, 128>}, {pipeline_mode = #tpu.pipeline_mode<synchronous>, transform_indices = @transform_5, window_bounds = array<i64: 1, 128>}, {transform_indices = @transform_6, window_bounds = array<i64: 8, 128>}]} {
    %c0 = arith.constant 0 : index
    %c0_0 = arith.constant 0 : index
    %0 = vector.load %arg1[%c0, %c0_0] : memref<32x128xbf16, #tpu.memory_space<vmem>>, vector<32x128xbf16>
    %c0_1 = arith.constant 0 : index
    %c0_2 = arith.constant 0 : index
    %1 = vector.load %arg2[%c0_1, %c0_2] : memref<128x128xbf16, #tpu.memory_space<vmem>>, vector<128x128xbf16>
    %cst = arith.constant dense<0.000000e+00> : vector<32x128xf32>
    %2 = tpu.matmul %0, %1, %cst {dimension_numbers = #tpu.dot_dimension_numbers<[1], [0], [0], [1], [0, 0, 1, 1], [], []>} : vector<32x128xbf16>, vector<128x128xbf16>, vector<32x128xf32> -> vector<32x128xf32>
    %c0_3 = arith.constant 0 : index
    %c0_4 = arith.constant 0 : index
    %3 = vector.load %arg3[%c0_3, %c0_4] : memref<1x128xf32, #tpu.memory_space<vmem>>, vector<1x128xf32>
    %4 = vector.broadcast %3 : vector<1x128xf32> to vector<32x128xf32>
    %5 = arith.addf %2, %4 : vector<32x128xf32>
    %c0_5 = arith.constant 0 : index
    %c0_6 = arith.constant 0 : index
    %6 = vector.load %arg4[%c0_5, %c0_6] : memref<1x128xf32, #tpu.memory_space<vmem>>, vector<1x128xf32>
    %7 = vector.broadcast %6 : vector<1x128xf32> to vector<32x128xf32>
    %8 = arith.addf %5, %7 : vector<32x128xf32>
    %9 = arith.truncf %8 : vector<32x128xf32> to vector<32x128xbf16>
    %c0_7 = arith.constant 0 : index
    %c0_8 = arith.constant 0 : index
    %10 = vector.load %arg5[%c0_7, %c0_8] : memref<128x128xbf16, #tpu.memory_space<vmem>>, vector<128x128xbf16>
    %cst_9 = arith.constant dense<0.000000e+00> : vector<32x128xf32>
    %11 = tpu.matmul %9, %10, %cst_9 {dimension_numbers = #tpu.dot_dimension_numbers<[1], [0], [0], [1], [0, 0, 1, 1], [], []>} : vector<32x128xbf16>, vector<128x128xbf16>, vector<32x128xf32> -> vector<32x128xf32>
    %c0_10 = arith.constant 0 : index
    %c0_11 = arith.constant 0 : index
    %12 = vector.load %arg6[%c0_10, %c0_11] : memref<1x128xf32, #tpu.memory_space<vmem>>, vector<1x128xf32>
    %13 = vector.broadcast %12 : vector<1x128xf32> to vector<32x128xf32>
    %14 = arith.addf %11, %13 : vector<32x128xf32>
    %cst_12 = arith.constant 5.000000e-01 : f32
    %15 = vector.broadcast %cst_12 : f32 to vector<32x128xf32>
    %16 = arith.mulf %15, %14 : vector<32x128xf32>
    %cst_13 = arith.constant 4.471500e-02 : f32
    %17 = vector.broadcast %cst_13 : f32 to vector<32x128xf32>
    %18 = arith.mulf %17, %14 : vector<32x128xf32>
    %19 = arith.mulf %18, %14 : vector<32x128xf32>
    %20 = arith.mulf %19, %14 : vector<32x128xf32>
    %21 = arith.addf %14, %20 : vector<32x128xf32>
    %cst_14 = arith.constant 0.797884583 : f32
    %22 = vector.broadcast %cst_14 : f32 to vector<32x128xf32>
    %23 = arith.mulf %22, %21 : vector<32x128xf32>
    %24 = math.tanh %23 : vector<32x128xf32>
    %cst_15 = arith.constant 1.000000e+00 : f32
    %25 = vector.broadcast %cst_15 : f32 to vector<32x128xf32>
    %26 = arith.addf %25, %24 : vector<32x128xf32>
    %27 = arith.mulf %16, %26 : vector<32x128xf32>
    %28 = arith.mulf %27, %5 : vector<32x128xf32>
    %cst_16 = arith.constant dense<0.000000e+00> : vector<32xf32>
    %29 = vector.multi_reduction <add>, %28, %cst_16 [1] : vector<32x128xf32> to vector<32xf32>
    %30 = vector.shape_cast %29 : vector<32xf32> to vector<32x1xf32>
    %cst_17 = arith.constant 0.0883883461 : f32
    %31 = vector.broadcast %cst_17 : f32 to vector<32x1xf32>
    %32 = arith.mulf %30, %31 : vector<32x1xf32>
    %33 = arith.negf %32 : vector<32x1xf32>
    %34 = math.exp %33 : vector<32x1xf32>
    %cst_18 = arith.constant 1.000000e+00 : f32
    %35 = vector.broadcast %cst_18 : f32 to vector<32x1xf32>
    %36 = arith.addf %35, %34 : vector<32x1xf32>
    %37 = arith.divf %35, %36 : vector<32x1xf32>
    %38 = tpu.iota {dimensions = array<i32: 0>} : vector<32x128xi32>
    %39 = tpu.iota {dimensions = array<i32: 1>} : vector<32x128xi32>
    %40 = arith.cmpi eq, %38, %39 : vector<32x128xi32>
    %cst_19 = arith.constant 0.000000e+00 : f32
    %41 = vector.shape_cast %37 : vector<32x1xf32> to vector<32x1xf32>
    %42 = vector.broadcast %41 : vector<32x1xf32> to vector<32x128xf32>
    %43 = vector.broadcast %cst_19 : f32 to vector<32x128xf32>
    %44 = arith.select %40, %42, %43 : vector<32x128xi1>, vector<32x128xf32>
    %cst_20 = arith.constant dense<0.000000e+00> : vector<128xf32>
    %45 = vector.multi_reduction <add>, %44, %cst_20 [0] : vector<32x128xf32> to vector<128xf32>
    %46 = vector.shape_cast %45 : vector<128xf32> to vector<1x128xf32>
    %cst_21 = arith.constant 0.000000e+00 : f32
    %47 = vector.broadcast %cst_21 : f32 to vector<8x128xf32>
    %c0_22 = arith.constant 0 : index
    %c0_23 = arith.constant 0 : index
    %48 = vector.load %arg7[%c0_22, %c0_23] : memref<8x128xf32, #tpu.memory_space<vmem>>, vector<8x128xf32>
    tpu.vector_store %arg7[%c0_22, %c0_23], %47 {strides = array<i32>} : memref<8x128xf32, #tpu.memory_space<vmem>>, vector<8x128xf32>,
    %c0_24 = arith.constant 0 : index
    %c0_25 = arith.constant 0 : index
    %49 = vector.load %arg7[%c0_24, %c0_25] : memref<8x128xf32, #tpu.memory_space<vmem>>, vector<1x128xf32>
    tpu.vector_store %arg7[%c0_24, %c0_25], %46 {strides = array<i32>} : memref<8x128xf32, #tpu.memory_space<vmem>>, vector<1x128xf32>,
    return
  }
  func.func @transform_0(%arg0: i32) -> (i32, i32) {
    %c0_i32 = arith.constant 0 : i32
    %c0_i32_0 = arith.constant 0 : i32
    return %arg0, %c0_i32 : i32, i32
  }
  func.func @transform_1(%arg0: i32) -> (i32, i32) {
    %c0_i32 = arith.constant 0 : i32
    %c0_i32_0 = arith.constant 0 : i32
    %c0_i32_1 = arith.constant 0 : i32
    return %c0_i32, %c0_i32_0 : i32, i32
  }
  func.func @transform_2(%arg0: i32) -> (i32, i32) {
    %c0_i32 = arith.constant 0 : i32
    %c0_i32_0 = arith.constant 0 : i32
    %c0_i32_1 = arith.constant 0 : i32
    return %c0_i32, %c0_i32_0 : i32, i32
  }
  func.func @transform_3(%arg0: i32) -> (i32, i32) {
    %c0_i32 = arith.constant 0 : i32
    %c0_i32_0 = arith.constant 0 : i32
    %c0_i32_1 = arith.constant 0 : i32
    return %c0_i32, %c0_i32_0 : i32, i32
  }
  func.func @transform_4(%arg0: i32) -> (i32, i32) {
    %c0_i32 = arith.constant 0 : i32
    %c0_i32_0 = arith.constant 0 : i32
    %c0_i32_1 = arith.constant 0 : i32
    return %c0_i32, %c0_i32_0 : i32, i32
  }
  func.func @transform_5(%arg0: i32) -> (i32, i32) {
    %c0_i32 = arith.constant 0 : i32
    %c0_i32_0 = arith.constant 0 : i32
    %c0_i32_1 = arith.constant 0 : i32
    return %c0_i32, %c0_i32_0 : i32, i32
  }
  func.func @transform_6(%arg0: i32) -> (i32, i32) {
    %c0_i32 = arith.constant 0 : i32
    %c0_i32_0 = arith.constant 0 : i32
    return %arg0, %c0_i32 : i32, i32
  }
}

</mosaic_0001>

<llo_original>
// kernel: squeeze.1
$region0: #{squeeze.1}
  %s0 = inlined_call_operand.vmem [shape: f32[32], index: 0, kind: input, shape index: {}]
  %s1 = inlined_call_operand.hbm [shape: f32[2,1,4,4], index: 1, kind: output, shape index: {}]
  $region1: #{squeeze.1} parent=0
    #allocation0 [shape = 'u8[4096]{0}', space=vmem, size = 0x1000, scoped, tag = 'operand span for operand 1']
    #allocation1 [shape = 's32[1]{0}', space=sflag, size = 0x4, scoped, tag = 'scoped memory for squeeze.1']
    #allocation2 [shape = 'u8[8192]{0}', space=vmem, size = 0x2000, scoped, tag = 'scoped mem for output reshape']
    #allocation3 [shape = 'u8[4096]{0}', space=vmem, size = 0x1000, scoped, tag = 'scoped mem for input reshape']
    %2 = vsyncpa [#allocation1], 0
    %s4 = sshllo.u32 0, 1
    %v5 = vld [vmem:[%s0] sm:%s4]
    %6 = vst [vmem:[#allocation3] sm:%s4] %v5
    %v7 = vld [vmem:[#allocation3] sm:$0x1]
    %vm8 = vcmask 31744
    %9 = vst.msk [vmem:[#allocation2] sm:$0x1] %vm8, %v7
    %v10 = vld [vmem:[#allocation3] sm:$0x1]
    %11 = vrot.lane.b32.xlu0 %v10, 124
    %v12 = vpop.permute.xlu0 %11
    %vm13 = vcmask 31744
    %s14 = scalar_lea.vmem [#allocation2], 1
    %15 = vst.msk [vmem:[%s14] sm:$0x1] %vm13, %v12
    %v16 = vld [vmem:[#allocation3] sm:$0x1]
    %17 = vrot.lane.b32.xlu0 %v16, 120
    %v18 = vpop.permute.xlu0 %17
    %vm19 = vcmask 31744
    %s20 = scalar_lea.vmem [#allocation2], 2
    %21 = vst.msk [vmem:[%s20] sm:$0x1] %vm19, %v18
    %v22 = vld [vmem:[#allocation3] sm:$0x1]
    %23 = vrot.lane.b32.xlu0 %v22, 116
    %v24 = vpop.permute.xlu0 %23
    %vm25 = vcmask 31744
    %s26 = scalar_lea.vmem [#allocation2], 3
    %27 = vst.msk [vmem:[%s26] sm:$0x1] %vm25, %v24
    %v28 = vld [vmem:[#allocation3] sm:$0x1]
    %29 = vrot.lane.b32.xlu0 %v28, 112
    %v30 = vpop.permute.xlu0 %29
    %vm31 = vcmask 31744
    %s32 = scalar_lea.vmem [#allocation2], 8
    %33 = vst.msk [vmem:[%s32] sm:$0x1] %vm31, %v30
    %v34 = vld [vmem:[#allocation3] sm:$0x1]
    %35 = vrot.lane.b32.xlu0 %v34, 108
    %v36 = vpop.permute.xlu0 %35
    %vm37 = vcmask 31744
    %s38 = scalar_lea.vmem [#allocation2], 9
    %39 = vst.msk [vmem:[%s38] sm:$0x1] %vm37, %v36
    %v40 = vld [vmem:[#allocation3] sm:$0x1]
    %41 = vrot.lane.b32.xlu0 %v40, 104
    %v42 = vpop.permute.xlu0 %41
    %vm43 = vcmask 31744
    %s44 = scalar_lea.vmem [#allocation2], 10
    %45 = vst.msk [vmem:[%s44] sm:$0x1] %vm43, %v42
    %v46 = vld [vmem:[#allocation3] sm:$0x1]
    %47 = vrot.lane.b32.xlu0 %v46, 100
    %v48 = vpop.permute.xlu0 %47
    %vm49 = vcmask 31744
    %s50 = scalar_lea.vmem [#allocation2], 11
    %51 = vst.msk [vmem:[%s50] sm:$0x1] %vm49, %v48
    %s53 = sshllo.u32 0, 4
    %v55 = vld [vmem:[#allocation2] sm:%s53]
    %s56 = sshllo.u32 0, 4
    %57 = vst [vmem:[#allocation0] sm:%s56] %v55
    %s58 = scalar_lea.vmem [#allocation2], 8
    %v59 = vld [vmem:[%s58] sm:%s53]
    %s60 = sshllo.u32 0, 4
    %s61 = scalar_lea.vmem [#allocation0], 4
    %62 = vst [vmem:[%s61] sm:%s60] %v59
    %s64 = ssub.s32 128, 128
    %65 = vsyncadd [#allocation1], %s64
    %s67 = sshll.u32 [#allocation0], 4
    %s68 = int_to_ptr.vmem [resolvable:$true] %s67
    %70 = dma.vmem_to_hbm [thread:$0]  %s68, 128, %s1, [#allocation1]
    %71 = dma.done [#allocation1], 128
    %72 = vsyncpa [#allocation1], 1

// kernel: _jitted_forward.1
$region0: #{_jitted_forward.1}
  #allocation0 [shape = 'u32[]', space=smem, size = 0x4, offset = 0x4, fixed_abs, tag = 'smem constant byte address 0x4 - core index']
  #allocation1 [shape = 'u32[144,128]{1,0:T(1,128)}', space=vmem, size = 0x12000, scoped, tag = 'internal scratch']
  %s0 = inlined_call_operand.vmem [shape: bf16[32,128], index: 0, kind: input, shape index: {}]
  %s1 = inlined_call_operand.vmem [shape: bf16[128,128], index: 1, kind: input, shape index: {}]
  %s2 = inlined_call_operand.vmem [shape: f32[1,128], index: 2, kind: input, shape index: {}]
  %s3 = inlined_call_operand.vmem [shape: f32[1,128], index: 3, kind: input, shape index: {}]
  %s4 = inlined_call_operand.vmem [shape: bf16[128,128], index: 4, kind: input, shape index: {}]
  %s5 = inlined_call_operand.vmem [shape: f32[1,128], index: 5, kind: input, shape index: {}]
  %s6 = inlined_call_operand.vmem [shape: f32[8,128], index: 6, kind: output, shape index: {}]
  %s7 = sld [smem:[#allocation0]]
  $region34: #{_jitted_forward.1} parent=0
    _
  %s9 = ssub.s32 1, %s7
  %s10 = scalar_select 0, %s9, %s7
  // Predicated region
  $region2: #{_jitted_forward.1} parent=0 // pred_check
    _
  $region3: #{_jitted_forward.1} parent=0 // pred_check_branch
    %12 = sbr.rel (0) target = $region5
  $region4: #{_jitted_forward.1} parent=0 // pred_region
    _
  $region5: #{_jitted_forward.1} parent=0 // pred_fallthru
    _
  // Predicated region
  $region6: #{_jitted_forward.1} parent=0 // pred_check
    _
  $region7: #{_jitted_forward.1} parent=0 // pred_check_branch
    %14 = sbr.rel (0) target = $region9
  $region8: #{_jitted_forward.1} parent=0 // pred_region
    _
  $region9: #{_jitted_forward.1} parent=0 // pred_fallthru
    _
  // Predicated region
  $region10: #{_jitted_forward.1} parent=0 // pred_check
    _
  $region11: #{_jitted_forward.1} parent=0 // pred_check_branch
    %16 = sbr.rel (0) target = $region13
  $region12: #{_jitted_forward.1} parent=0 // pred_region
    _
  $region13: #{_jitted_forward.1} parent=0 // pred_fallthru
    _
  // Predicated region
  $region14: #{_jitted_forward.1} parent=0 // pred_check
    _
  $region15: #{_jitted_forward.1} parent=0 // pred_check_branch
    %18 = sbr.rel (0) target = $region17
  $region16: #{_jitted_forward.1} parent=0 // pred_region
    _
  $region17: #{_jitted_forward.1} parent=0 // pred_fallthru
    _
  // Predicated region
  $region18: #{_jitted_forward.1} parent=0 // pred_check
    _
  $region19: #{_jitted_forward.1} parent=0 // pred_check_branch
    %20 = sbr.rel (0) target = $region21
  $region20: #{_jitted_forward.1} parent=0 // pred_region
    _
  $region21: #{_jitted_forward.1} parent=0 // pred_fallthru
    _
  // Predicated region
  $region22: #{_jitted_forward.1} parent=0 // pred_check
    _
  $region23: #{_jitted_forward.1} parent=0 // pred_check_branch
    %22 = sbr.rel (0) target = $region25
  $region24: #{_jitted_forward.1} parent=0 // pred_region
    _
  $region25: #{_jitted_forward.1} parent=0 // pred_fallthru
    _
  %v24 = vld [vmem:[%s0] sm:$0xf]
  %v25 = vld [vmem:[%s0 + $0x4] sm:$0xf]
  %v26 = vld [vmem:[%s0 + $0x8] sm:$0xf]
  %v27 = vld [vmem:[%s0 + $0xc] sm:$0xf]
  %v28 = vld [vmem:[%s1] sm:$0xf]
  %v29 = vld [vmem:[%s1 + $0x4] sm:$0xf]
  %v30 = vld [vmem:[%s1 + $0x8] sm:$0xf]
  %v31 = vld [vmem:[%s1 + $0xc] sm:$0xf]
  %v32 = vld [vmem:[%s1 + $0x10] sm:$0xf]
  %v33 = vld [vmem:[%s1 + $0x14] sm:$0xf]
  %v34 = vld [vmem:[%s1 + $0x18] sm:$0xf]
  %v35 = vld [vmem:[%s1 + $0x1c] sm:$0xf]
  %v36 = vld [vmem:[%s1 + $0x20] sm:$0xf]
  %v37 = vld [vmem:[%s1 + $0x24] sm:$0xf]
  %v38 = vld [vmem:[%s1 + $0x28] sm:$0xf]
  %v39 = vld [vmem:[%s1 + $0x2c] sm:$0xf]
  %v40 = vld [vmem:[%s1 + $0x30] sm:$0xf]
  %v41 = vld [vmem:[%s1 + $0x34] sm:$0xf]
  %v42 = vld [vmem:[%s1 + $0x38] sm:$0xf]
  %v43 = vld [vmem:[%s1 + $0x3c] sm:$0xf]
  %v44 = vld [vmem:[%s2] sm:$0x1]
  %v46 = vlaneseq
  %v47 = vshrl.u32 %v46, 7
  %v48 = vsub.s32 0, %v47
  %v49 = vrot.slane %v44, %v48
  %v55 = vunpack.c.l.b16 %v24
  %v56 = vunpack.c.l.b16 %v25
  %v57 = vunpack.c.l.b16 %v26
  %v58 = vunpack.c.l.b16 %v27
  %v59 = vpack.c.b16 %v56, %v55
  %v60 = vpack.c.b16 %v58, %v57
  %v79 = vunpack.c.l.b16 %v28
  %v80 = vunpack.c.l.b16 %v29
  %v81 = vunpack.c.l.b16 %v30
  %v82 = vunpack.c.l.b16 %v31
  %v83 = vunpack.c.l.b16 %v32
  %v84 = vunpack.c.l.b16 %v33
  %v85 = vunpack.c.l.b16 %v34
  %v86 = vunpack.c.l.b16 %v35
  %v87 = vunpack.c.l.b16 %v36
  %v88 = vunpack.c.l.b16 %v37
  %v89 = vunpack.c.l.b16 %v38
  %v90 = vunpack.c.l.b16 %v39
  %v91 = vunpack.c.l.b16 %v40
  %v92 = vunpack.c.l.b16 %v41
  %v93 = vunpack.c.l.b16 %v42
  %v94 = vunpack.c.l.b16 %v43
  %v95 = vpack.c.b16 %v80, %v79
  %v96 = vpack.c.b16 %v82, %v81
  %v97 = vpack.c.b16 %v84, %v83
  %v98 = vpack.c.b16 %v86, %v85
  %v99 = vpack.c.b16 %v88, %v87
  %v100 = vpack.c.b16 %v90, %v89
  %v101 = vpack.c.b16 %v92, %v91
  %v102 = vpack.c.b16 %v94, %v93
  %111 = vmatprep.subr.bf16.mxu0 0
  %112 = vmatpush1.bf16.msra.mxu0 %v95
  %113 = vmatprep.subr.bf16.mxu0 0
  %114 = vmatpush1.bf16.msra.mxu0 %v96
  %115 = vmatprep.subr.bf16.mxu0 0
  %116 = vmatpush1.bf16.msra.mxu0 %v97
  %117 = vmatprep.subr.bf16.mxu0 0
  %118 = vmatpush1.bf16.msra.mxu0 %v98
  %119 = vmatprep.subr.bf16.mxu0 0
  %120 = vmatpush1.bf16.msra.mxu0 %v99
  %121 = vmatprep.subr.bf16.mxu0 0
  %122 = vmatpush1.bf16.msra.mxu0 %v100
  %123 = vmatprep.subr.bf16.mxu0 0
  %124 = vmatpush1.bf16.msra.mxu0 %v101
  %125 = vmatprep.subr.bf16.mxu0 0
  %126 = vmatpush1.bf16.msra.mxu0 %v102
  %127 = vmatprep.subr.bf16.mxu0 0
  %128 = vmatpush1.bf16.msra.mxu0 0
  %129 = vmatprep.subr.bf16.mxu0 0
  %130 = vmatpush1.bf16.msra.mxu0 0
  %131 = vmatprep.subr.bf16.mxu0 0
  %132 = vmatpush1.bf16.msra.mxu0 0
  %133 = vmatprep.subr.bf16.mxu0 0
  %134 = vmatpush1.bf16.msra.mxu0 0
  %135 = vmatprep.subr.bf16.mxu0 0
  %136 = vmatpush1.bf16.msra.mxu0 0
  %137 = vmatprep.subr.bf16.mxu0 0
  %138 = vmatpush1.bf16.msra.mxu0 0
  %139 = vmatprep.subr.bf16.mxu0 0
  %140 = vmatpush1.bf16.msra.mxu0 0
  %141 = vmatprep.subr.bf16.mxu0 0
  %142 = vmatpush1.bf16.msra.mxu0 0
  %143 = vmatprep.mubr.bf16.mxu0 0
  %144 = vmatmul.mubr.bf16.gmra.mrb[0].mxu0 %v59
  %v145 = vpop.f32.mrb[0].mxu0
  %v146 = vadd.f32 %v49, %v145
  %v147 = vpop.f32.mrb[0].mxu0
  %v148 = vpop.f32.mrb[0].mxu0
  %v149 = vadd.f32 %v49, %v148
  %v150 = vpop.f32.mrb[0].mxu0
  %151 = vmatprep.mubr.bf16.mxu0 0
  %152 = vmatmul.mubr.bf16.gmra.mrb[0].mxu0 %v60
  %v153 = vpop.f32.mrb[0].mxu0
  %v154 = vadd.f32 %v49, %v153
  %v155 = vpop.f32.mrb[0].mxu0
  %v156 = vpop.f32.mrb[0].mxu0
  %v157 = vadd.f32 %v49, %v156
  %v158 = vpop.f32.mrb[0].mxu0
  %159 = vdwg.mxu0
  %v160 = vld [vmem:[%s3] sm:$0x1]
  %v162 = vlaneseq
  %v163 = vshrl.u32 %v162, 7
  %v164 = vsub.s32 0, %v163
  %v165 = vrot.slane %v160, %v164
  %v167 = vadd.f32 %v146, %v165
  %v168 = vadd.f32 %v149, %v165
  %v169 = vadd.f32 %v154, %v165
  %v170 = vadd.f32 %v157, %v165
  %v171 = vpack.c.bf16 %v168, %v167
  %v172 = vpack.c.bf16 %v170, %v169
  %v173 = vld [vmem:[%s4] sm:$0xf]
  %v174 = vld [vmem:[%s4 + $0x4] sm:$0xf]
  %v175 = vld [vmem:[%s4 + $0x8] sm:$0xf]
  %v176 = vld [vmem:[%s4 + $0xc] sm:$0xf]
  %v177 = vld [vmem:[%s4 + $0x10] sm:$0xf]
  %v178 = vld [vmem:[%s4 + $0x14] sm:$0xf]
  %v179 = vld [vmem:[%s4 + $0x18] sm:$0xf]
  %v180 = vld [vmem:[%s4 + $0x1c] sm:$0xf]
  %v181 = vld [vmem:[%s4 + $0x20] sm:$0xf]
  %v182 = vld [vmem:[%s4 + $0x24] sm:$0xf]
  %v183 = vld [vmem:[%s4 + $0x28] sm:$0xf]
  %v184 = vld [vmem:[%s4 + $0x2c] sm:$0xf]
  %v185 = vld [vmem:[%s4 + $0x30] sm:$0xf]
  %v186 = vld [vmem:[%s4 + $0x34] sm:$0xf]
  %v187 = vld [vmem:[%s4 + $0x38] sm:$0xf]
  %v188 = vld [vmem:[%s4 + $0x3c] sm:$0xf]
  %v189 = vld [vmem:[%s5] sm:$0x1]
  %v191 = vlaneseq
  %v192 = vshrl.u32 %v191, 7
  %v193 = vsub.s32 0, %v192
  %v194 = vrot.slane %v189, %v193
  %v212 = vunpack.c.l.b16 %v173
  %v213 = vunpack.c.l.b16 %v174
  %v214 = vunpack.c.l.b16 %v175
  %v215 = vunpack.c.l.b16 %v176
  %v216 = vunpack.c.l.b16 %v177
  %v217 = vunpack.c.l.b16 %v178
  %v218 = vunpack.c.l.b16 %v179
  %v219 = vunpack.c.l.b16 %v180
  %v220 = vunpack.c.l.b16 %v181
  %v221 = vunpack.c.l.b16 %v182
  %v222 = vunpack.c.l.b16 %v183
  %v223 = vunpack.c.l.b16 %v184
  %v224 = vunpack.c.l.b16 %v185
  %v225 = vunpack.c.l.b16 %v186
  %v226 = vunpack.c.l.b16 %v187
  %v227 = vunpack.c.l.b16 %v188
  %v228 = vpack.c.b16 %v213, %v212
  %v229 = vpack.c.b16 %v215, %v214
  %v230 = vpack.c.b16 %v217, %v216
  %v231 = vpack.c.b16 %v219, %v218
  %v232 = vpack.c.b16 %v221, %v220
  %v233 = vpack.c.b16 %v223, %v222
  %v234 = vpack.c.b16 %v225, %v224
  %v235 = vpack.c.b16 %v227, %v226
  %244 = vmatprep.subr.bf16.mxu0 0
  %245 = vmatpush1.bf16.msra.mxu0 %v228
  %246 = vmatprep.subr.bf16.mxu0 0
  %247 = vmatpush1.bf16.msra.mxu0 %v229
  %248 = vmatprep.subr.bf16.mxu0 0
  %249 = vmatpush1.bf16.msra.mxu0 %v230
  %250 = vmatprep.subr.bf16.mxu0 0
  %251 = vmatpush1.bf16.msra.mxu0 %v231
  %252 = vmatprep.subr.bf16.mxu0 0
  %253 = vmatpush1.bf16.msra.mxu0 %v232
  %254 = vmatprep.subr.bf16.mxu0 0
  %255 = vmatpush1.bf16.msra.mxu0 %v233
  %256 = vmatprep.subr.bf16.mxu0 0
  %257 = vmatpush1.bf16.msra.mxu0 %v234
  %258 = vmatprep.subr.bf16.mxu0 0
  %259 = vmatpush1.bf16.msra.mxu0 %v235
  %260 = vmatprep.subr.bf16.mxu0 0
  %261 = vmatpush1.bf16.msra.mxu0 0
  %262 = vmatprep.subr.bf16.mxu0 0
  %263 = vmatpush1.bf16.msra.mxu0 0
  %264 = vmatprep.subr.bf16.mxu0 0
  %265 = vmatpush1.bf16.msra.mxu0 0
  %266 = vmatprep.subr.bf16.mxu0 0
  %267 = vmatpush1.bf16.msra.mxu0 0
  %268 = vmatprep.subr.bf16.mxu0 0
  %269 = vmatpush1.bf16.msra.mxu0 0
  %270 = vmatprep.subr.bf16.mxu0 0
  %271 = vmatpush1.bf16.msra.mxu0 0
  %272 = vmatprep.subr.bf16.mxu0 0
  %273 = vmatpush1.bf16.msra.mxu0 0
  %274 = vmatprep.subr.bf16.mxu0 0
  %275 = vmatpush1.bf16.msra.mxu0 0
  %276 = vmatprep.mubr.bf16.mxu0 0
  %277 = vmatmul.mubr.bf16.gmra.mrb[0].mxu0 %v171
  %v278 = vpop.f32.mrb[0].mxu0
  %v279 = vadd.f32 %v194, %v278
  %v280 = vpop.f32.mrb[0].mxu0
  %v281 = vpop.f32.mrb[0].mxu0
  %v282 = vadd.f32 %v194, %v281
  %v283 = vpop.f32.mrb[0].mxu0
  %284 = vmatprep.mubr.bf16.mxu0 0
  %285 = vmatmul.mubr.bf16.gmra.mrb[0].mxu0 %v172
  %v286 = vpop.f32.mrb[0].mxu0
  %v287 = vadd.f32 %v194, %v286
  %v288 = vpop.f32.mrb[0].mxu0
  %v289 = vpop.f32.mrb[0].mxu0
  %v290 = vadd.f32 %v194, %v289
  %v291 = vpop.f32.mrb[0].mxu0
  %292 = vdwg.mxu0
  %v293 = vmul.f32 %v279, 0.5
  %v294 = vmul.f32 %v282, 0.5
  %v295 = vmul.f32 %v287, 0.5
  %v296 = vmul.f32 %v290, 0.5
  %v297 = vmul.f32 %v279, 0.044715
  %v298 = vmul.f32 %v282, 0.044715
  %v299 = vmul.f32 %v287, 0.044715
  %v300 = vmul.f32 %v290, 0.044715
  %v301 = vmul.f32 %v297, %v279
  %v302 = vmul.f32 %v298, %v282
  %v303 = vmul.f32 %v299, %v287
  %v304 = vmul.f32 %v300, %v290
  %v305 = vmul.f32 %v301, %v279
  %v306 = vmul.f32 %v302, %v282
  %v307 = vmul.f32 %v303, %v287
  %v308 = vmul.f32 %v304, %v290
  %v309 = vadd.f32 %v279, %v305
  %v310 = vadd.f32 %v282, %v306
  %v311 = vadd.f32 %v287, %v307
  %v312 = vadd.f32 %v290, %v308
  %v313 = vmul.f32 %v309, 0.7978846
  %v314 = vmul.f32 %v310, 0.7978846
  %v315 = vmul.f32 %v311, 0.7978846
  %v316 = vmul.f32 %v312, 0.7978846
  %v317 = vtanh.pop %v313
  %v318 = vtanh.pop %v314
  %v319 = vtanh.pop %v315
  %v320 = vtanh.pop %v316
  %v321 = vadd.f32 %v317, 1.0
  %v322 = vadd.f32 %v318, 1.0
  %v323 = vadd.f32 %v319, 1.0
  %v324 = vadd.f32 %v320, 1.0
  %v325 = vmul.f32 %v293, %v321
  %v326 = vmul.f32 %v294, %v322
  %v327 = vmul.f32 %v295, %v323
  %v328 = vmul.f32 %v296, %v324
  %v329 = vmul.f32 %v325, %v146
  %v330 = vmul.f32 %v326, %v149
  %v331 = vmul.f32 %v327, %v154
  %v332 = vmul.f32 %v328, %v157
  %333 = vadd.xlane.f32.xlu0 %v329
  %v334 = vpop.xlane.xlu0 %333
  %335 = vadd.xlane.f32.xlu0 %v330
  %v336 = vpop.xlane.xlu0 %335
  %337 = vadd.xlane.f32.xlu0 %v331
  %v338 = vpop.xlane.xlu0 %337
  %339 = vadd.xlane.f32.xlu0 %v332
  %v340 = vpop.xlane.xlu0 %339
  %v341 = vmul.f32 %v334, 0.088388346
  %v342 = vmul.f32 %v336, 0.088388346
  %v343 = vmul.f32 %v338, 0.088388346
  %v344 = vmul.f32 %v340, 0.088388346
  %v345 = vxor.u32 %v341, 2147483648
  %v346 = vxor.u32 %v342, 2147483648
  %v347 = vxor.u32 %v343, 2147483648
  %v348 = vxor.u32 %v344, 2147483648
  %v349 = vmul.f32 %v345, 1.442695
  %v350 = vpow.pop %v349
  %v351 = vmul.f32 %v346, 1.442695
  %v352 = vpow.pop %v351
  %v353 = vmul.f32 %v347, 1.442695
  %v354 = vpow.pop %v353
  %v355 = vmul.f32 %v348, 1.442695
  %v356 = vpow.pop %v355
  %v357 = vadd.f32 %v350, 1.0
  %v358 = vadd.f32 %v352, 1.0
  %v359 = vadd.f32 %v354, 1.0
  %v360 = vadd.f32 %v356, 1.0
  %v361 = vrcp.pop %v357
  %v362 = vmul.f32 1.0, %v361
  %v363 = vrcp.pop %v358
  %v364 = vmul.f32 1.0, %v363
  %v365 = vrcp.pop %v359
  %v366 = vmul.f32 1.0, %v365
  %v367 = vrcp.pop %v360
  %v368 = vmul.f32 1.0, %v367
  %v369 = vlaneseq
  %v370 = vshrl.u32 %v369, 7
  %v371 = vadd.s32 %v370, 8
  %v372 = vadd.s32 %v370, 16
  %v373 = vadd.s32 %v370, 24
  %v374 = vlaneseq
  %v375 = vand.u32 %v374, 127
  %vm376 = vcmp.eq.s32.totalorder %v370, %v375
  %vm377 = vcmp.eq.s32.totalorder %v371, %v375
  %vm378 = vcmp.eq.s32.totalorder %v372, %v375
  %vm379 = vcmp.eq.s32.totalorder %v373, %v375
  %v380 = vsel %vm376, %v362, 0.0
  %v381 = vsel %vm377, %v364, 0.0
  %v382 = vsel %vm378, %v366, 0.0
  %v383 = vsel %vm379, %v368, 0.0
  %v384 = vadd.f32 %v380, %v381
  %v385 = vadd.f32 %v384, %v382
  %v386 = vadd.f32 %v385, %v383
  %v387 = vrot.slane %v386, 4
  %v388 = vadd.f32 %v386, %v387
  %v389 = vrot.slane %v388, 2
  %v390 = vadd.f32 %v388, %v389
  %v391 = vrot.slane %v390, 1
  %v392 = vadd.f32 %v390, %v391
  %393 = vst [vmem:[%s6] sm:$0xff] 0.0
  %394 = vst [vmem:[%s6] sm:$0x1] %v392
  // Predicated region
  $region26: #{_jitted_forward.1} parent=0 // pred_check
    _
  $region27: #{_jitted_forward.1} parent=0 // pred_check_branch
    %396 = sbr.rel (0) target = $region29
  $region28: #{_jitted_forward.1} parent=0 // pred_region
    _
  $region29: #{_jitted_forward.1} parent=0 // pred_fallthru
    _
  // Predicated region
  $region30: #{_jitted_forward.1} parent=0 // pred_check
    _
  $region31: #{_jitted_forward.1} parent=0 // pred_check_branch
    %398 = sbr.rel (0) target = $region33
  $region32: #{_jitted_forward.1} parent=0 // pred_region
    _
  $region33: #{_jitted_forward.1} parent=0 // pred_fallthru
    _

</llo_original>
